<compile_context>
chip_gen: v5e
topology: v5e:2x2
jax: 0.10.0
libtpu: 0.0.40
codegen_flags: <defaults>
</compile_context>

<pallas_src>
import functools

import jax
import jax.numpy as jnp
from jax.experimental import pallas as pl
from jax.experimental.pallas import tpu as pltpu


def _round_up(x, m):
    return (x + m - 1) // m * m


def _cdiv(a, b):
    return -(-a // b)


# --------------------------------------------------------------------------
# Kernel
# --------------------------------------------------------------------------
def _mlp_kernel(x_ref, w1_ref, b1_ref, w2_ref, b2_ref, o_ref, acc_ref):
    # x:   (TB, n_in)  f32   (cast to bf16 in-kernel)
    # w1:  (n_in, TK)  bf16  (pre-transposed hidden chunk; padded cols zero)
    # b1:  (1, TK)     f32   (padded entries zero)
    # w2:  (TK, Np)    bf16  (pre-transposed hidden chunk; padded rows/cols zero)
    # b2:  (1, Np)     f32   (padded entries -1e30 so they vanish in logsumexp)
    # o:   (TB, Np)    out dtype
    # acc: (TB, Np)    f32 logits accumulator (VMEM scratch)
    k = pl.program_id(1)

    @pl.when(k == 0)
    def _():
        acc_ref[...] = jnp.zeros_like(acc_ref)

    xb = x_ref[...].astype(jnp.bfloat16)                     # VPU cast, hidden under MXU
    h = jnp.dot(xb, w1_ref[...], preferred_element_type=jnp.float32)
    h = jnp.maximum(h + b1_ref[...], 0.0)                    # f32 bias + ReLU
    acc_ref[...] += jnp.dot(h.astype(jnp.bfloat16), w2_ref[...],
                            preferred_element_type=jnp.float32)

    @pl.when(k == pl.num_programs(1) - 1)
    def _():
        logits = acc_ref[...] + b2_ref[...]                  # padded cols -> ~-1e30
        m = jnp.max(logits, axis=-1, keepdims=True)
        shifted = logits - m
        lse = jnp.log(jnp.sum(jnp.exp(shifted), axis=-1, keepdims=True))
        o_ref[...] = (shifted - lse).astype(o_ref.dtype)


# --------------------------------------------------------------------------
# Sizing helpers
# --------------------------------------------------------------------------
def _vmem_budget():
    """Per-generation VMEM budget (tiles) and scoped vmem limit, in bytes."""
    cap = None
    try:
        info = pltpu.get_tpu_info()
        for attr in ("vmem_capacity_bytes", "vmem_bytes", "vmem_size_bytes"):
            v = getattr(info, attr, None)
            if v:
                cap = int(v)
                break
    except Exception:
        cap = None
    if not cap:
        cap = 64 << 20                       # conservative fallback (v7x-sized)
    vmem_limit = min(int(cap * 0.75), 96 << 20)   # 48 MiB on v7x, 96 MiB on v5e/v6e
    budget = min(int(cap * 0.55), 64 << 20)       # ~35 MiB on v7x, 64 MiB on v5e/v6e
    return budget, vmem_limit


def _pick_tiles(n_in, hp, n_out_p, batch, budget_bytes, out_bytes):
    """Pick (batch tile tb, hidden chunk tk) within the VMEM budget.

    Pallas double-buffers every pipelined input by default, so all streamed /
    resident operands are counted 2x.
    """
    def weight_bytes(tk):
        per_chunk = (n_in * tk * 2          # w1 chunk (bf16)
                     + tk * 4               # b1 chunk (f32)
                     + tk * n_out_p * 2     # w2 chunk (bf16)
                     + n_out_p * 4)         # b2 (f32)
        return 2 * per_chunk                # double-buffered

    def row_bytes(tk):
        return (2 * n_in * 4                # x tile (f32), double-buffered
                + 2 * n_out_p * out_bytes   # out tile, double-buffered
                + n_out_p * 4               # f32 logits accumulator scratch
                + tk * 6)                   # live hidden chunk (f32 + bf16 copy)

    # Hidden chunking: single chunk if it leaves room for a decent batch tile,
    # otherwise stream 512/256/128-wide chunks (multiples of the MXU width).
    tk = hp
    if hp % 128 == 0 and weight_bytes(tk) + row_bytes(tk) * 128 > budget_bytes:
        for cand in (512, 256, 128):
            if hp % cand == 0:
                tk = cand
                if weight_bytes(tk) + row_bytes(tk) * 128 <= budget_bytes:
                    break

    avail = budget_bytes - weight_bytes(tk)
    tb = max(avail // row_bytes(tk), 8)

    # v7x megacore: keep >= 4 batch grid steps when the batch is large enough
    # so dimension_semantics=("parallel", ...) actually has work to shard.
    tb = min(tb, max(_round_up(_cdiv(batch, 4), 8), 8))

    # MXU-friendly rounding: multiples of 128 when large, multiples of 8 otherwise.
    if tb >= 256:
        tb = min(tb // 128 * 128, 1024)
    else:
        tb = max(tb // 8 * 8, 8)
    return int(tb), int(tk)


# --------------------------------------------------------------------------
# Parameter prep (one-time, hoisted out of the per-call hot path)
# --------------------------------------------------------------------------
def prepare_params(w1, b1, w2, b2):
    """w1: (n_hidden, n_inputs), b1: (n_hidden,), w2: (n_targets, n_hidden),
    b2: (n_targets,)  -- PyTorch nn.Linear layouts.

    Returns pre-transposed, padded, bf16/f32 parameters for the kernel.
    """
    n_hidden, n_in = w1.shape
    n_targets = w2.shape[0]
    n_out_p = _round_up(max(n_targets, 1), 128)       # lane-dense padded width

    # Pad hidden to a multiple of 128 only when it is large enough to be
    # chunk-streamed; tiny hidden widths stay un-padded (single full chunk).
    hp = _round_up(n_hidden, 128) if n_hidden >= 128 else n_hidden

    w1t = jnp.zeros((n_in, hp), jnp.bfloat16)
    w1t = w1t.at[:, :n_hidden].set(w1.T.astype(jnp.bfloat16))       # (n_in, Hp)
    b1p = jnp.zeros((1, hp), jnp.float32)
    b1p = b1p.at[0, :n_hidden].set(b1.astype(jnp.float32))          # (1, Hp)
    w2t = jnp.zeros((hp, n_out_p), jnp.bfloat16)
    w2t = w2t.at[:n_hidden, :n_targets].set(w2.T.astype(jnp.bfloat16))  # (Hp, Np)
    b2p = jnp.full((1, n_out_p), -1e30, jnp.float32)
    b2p = b2p.at[0, :n_targets].set(b2.astype(jnp.float32))         # (1, Np)
    return (w1t, b1p, w2t, b2p, int(n_targets))


# --------------------------------------------------------------------------
# Forward
# --------------------------------------------------------------------------
@functools.partial(jax.jit, static_argnames=("n_targets", "out_dtype"))
def _forward(x2d, w1t, b1p, w2t, b2p, *, n_targets, out_dtype=jnp.float32):
    B, n_in = x2d.shape
    hp, n_out_p = w2t.shape
    out_bytes = jnp.dtype(out_dtype).itemsize

    budget, vmem_limit = _vmem_budget()
    tb, tk = _pick_tiles(n_in, hp, n_out_p, B, budget, out_bytes)

    grid = (pl.cdiv(B, tb), hp // tk)      # batch (parallel) outer, hidden (reduction) last

    cost = pl.CostEstimate(
        flops=2 * B * (n_in * hp + hp * n_out_p),
        transcendentals=B * (n_out_p + 1),
        bytes_accessed=(B * n_in * 4
                        + (n_in * hp + hp * n_out_p) * 2
                        + (hp + n_out_p) * 4
                        + B * n_out_p * out_bytes),
    )

    out = pl.pallas_call(
        _mlp_kernel,
        out_shape=jax.ShapeDtypeStruct((B, n_out_p), out_dtype),
        grid=grid,
        in_specs=[
            pl.BlockSpec((tb, n_in), lambda i, k: (i, 0)),      # x tile (f32)
            pl.BlockSpec((n_in, tk), lambda i, k: (0, k)),      # w1 chunk
            pl.BlockSpec((1, tk), lambda i, k: (0, k)),         # b1 chunk
            pl.BlockSpec((tk, n_out_p), lambda i, k: (k, 0)),   # w2 chunk
            pl.BlockSpec((1, n_out_p), lambda i, k: (0, 0)),    # b2 (resident)
        ],
        out_specs=pl.BlockSpec((tb, n_out_p), lambda i, k: (i, 0)),
        scratch_shapes=[pltpu.VMEM((tb, n_out_p), jnp.float32)],  # logits accumulator
        compiler_params=pltpu.CompilerParams(
            dimension_semantics=("parallel", "arbitrary"),
            vmem_limit_bytes=vmem_limit,
        ),
        cost_estimate=cost,
    )(x2d, w1t, b1p, w2t, b2p)

    # Padded (garbage) columns / any partial-block rows are sliced off here;
    # callers must not reduce over the raw padded output.
    return out[:B, :n_targets]


def feed_forward_network(x, params, out_dtype=jnp.float32):
    """Forward pass matching FeedForwardNetwork.forward.

    x: (B, ...) -> flattened to (B, n_inputs); returns (B, n_targets) log-probs.
    """
    w1t, b1p, w2t, b2p, n_targets = params
    x2d = x.reshape(x.shape[0], -1)          # torch.flatten(x, 1); dtype kept (f32)
    return _forward(x2d, w1t, b1p, w2t, b2p,
                    n_targets=n_targets, out_dtype=out_dtype)


# --------------------------------------------------------------------------
# Test
# --------------------------------------------------------------------------
if __name__ == "__main__":
    # Small shapes consistent with the module: tabular dataset with n_inputs
    # features, n_targets classes, hidden width n_hidden.
    batch = 8
    n_inputs = 16
    n_hidden = 32
    n_targets = 4

    key = jax.random.PRNGKey(0)
    kx, kw1, kb1, kw2, kb2 = jax.random.split(key, 5)

    x = jax.random.normal(kx, (batch, n_inputs), dtype=jnp.float32)
    # nn.Linear layouts: weights are (out_features, in_features).
    w1 = jax.random.normal(kw1, (n_hidden, n_inputs), dtype=jnp.float32) * 0.1
    b1 = jax.random.normal(kb1, (n_hidden,), dtype=jnp.float32) * 0.1
    w2 = jax.random.normal(kw2, (n_targets, n_hidden), dtype=jnp.float32) * 0.1
    b2 = jax.random.normal(kb2, (n_targets,), dtype=jnp.float32) * 0.1

    params = prepare_params(w1, b1, w2, b2)
    out = feed_forward_network(x, params)
    out = jax.block_until_ready(out)

    # Reference with the same bf16-operand / f32-accumulate math.
    xb = x.astype(jnp.bfloat16)
    h_ref = jnp.maximum(
        jnp.dot(xb, w1.astype(jnp.bfloat16).T,
                preferred_element_type=jnp.float32) + b1, 0.0)
    logits_ref = jnp.dot(h_ref.astype(jnp.bfloat16), w2.astype(jnp.bfloat16).T,
                         preferred_element_type=jnp.float32) + b2
    ref = jax.nn.log_softmax(logits_ref, axis=1)

    assert out.shape == (batch, n_targets)
    assert jnp.allclose(out, ref, atol=2e-3, rtol=2e-3), (
        f"max abs err = {jnp.max(jnp.abs(out - ref))}")

    print("KERNEL_OK")
</pallas_src>

<mosaic_0001>
module attributes {stable_mosaic.version = 11 : i64} {
  func.func @_mlp_kernel(%arg0: i32, %arg1: i32, %arg2: memref<8x16xf32, #tpu.memory_space<vmem>>, %arg3: memref<16x32xbf16, #tpu.memory_space<vmem>>, %arg4: memref<1x32xf32, #tpu.memory_space<vmem>>, %arg5: memref<32x128xbf16, #tpu.memory_space<vmem>>, %arg6: memref<1x128xf32, #tpu.memory_space<vmem>>, %arg7: memref<8x128xf32, #tpu.memory_space<vmem>>, %arg8: memref<8x128xf32, #tpu.memory_space<vmem>>) attributes {dimension_semantics = [#tpu.dimension_semantics<parallel>, #tpu.dimension_semantics<arbitrary>], iteration_bounds = array<i64: 1, 1>, scalar_prefetch = 0 : i64, scratch_operands = 1 : i64, tpu.core_type = #tpu.core_type<tc>, window_params = [{transform_indices = @transform_0, window_bounds = array<i64: 8, 16>}, {transform_indices = @transform_1, window_bounds = array<i64: 16, 32>}, {transform_indices = @transform_2, window_bounds = array<i64: 1, 32>}, {transform_indices = @transform_3, window_bounds = array<i64: 32, 128>}, {pipeline_mode = #tpu.pipeline_mode<synchronous>, transform_indices = @transform_4, window_bounds = array<i64: 1, 128>}, {transform_indices = @transform_5, window_bounds = array<i64: 8, 128>}]} {
    %c0_i32 = arith.constant 0 : i32
    %0 = arith.cmpi eq, %arg1, %c0_i32 : i32
    %1 = arith.extui %0 : i1 to i32
    %c0_i32_0 = arith.constant 0 : i32
    %2 = arith.cmpi ne, %1, %c0_i32_0 : i32
    scf.if %2 {
      %cst_16 = arith.constant 0.000000e+00 : f32
      %21 = vector.broadcast %cst_16 : f32 to vector<8x128xf32>
      %c0_17 = arith.constant 0 : index
      %c0_18 = arith.constant 0 : index
      %22 = vector.load %arg8[%c0_17, %c0_18] : memref<8x128xf32, #tpu.memory_space<vmem>>, vector<8x128xf32>
      tpu.vector_store %arg8[%c0_17, %c0_18], %21 {strides = array<i32>} : memref<8x128xf32, #tpu.memory_space<vmem>>, vector<8x128xf32>,
    } else {
    }
    %c0 = arith.constant 0 : index
    %c0_1 = arith.constant 0 : index
    %3 = vector.load %arg2[%c0, %c0_1] : memref<8x16xf32, #tpu.memory_space<vmem>>, vector<8x16xf32>
    %4 = arith.truncf %3 : vector<8x16xf32> to vector<8x16xbf16>
    %c0_2 = arith.constant 0 : index
    %c0_3 = arith.constant 0 : index
    %5 = vector.load %arg3[%c0_2, %c0_3] : memref<16x32xbf16, #tpu.memory_space<vmem>>, vector<16x32xbf16>
    %cst = arith.constant dense<0.000000e+00> : vector<8x32xf32>
    %6 = tpu.matmul %4, %5, %cst {dimension_numbers = #tpu.dot_dimension_numbers<[1], [0], [0], [1], [0, 0, 1, 1], [], []>} : vector<8x16xbf16>, vector<16x32xbf16>, vector<8x32xf32> -> vector<8x32xf32>
    %c0_4 = arith.constant 0 : index
    %c0_5 = arith.constant 0 : index
    %7 = vector.load %arg4[%c0_4, %c0_5] : memref<1x32xf32, #tpu.memory_space<vmem>>, vector<1x32xf32>
    %8 = vector.broadcast %7 : vector<1x32xf32> to vector<8x32xf32>
    %9 = arith.addf %6, %8 : vector<8x32xf32>
    %cst_6 = arith.constant 0.000000e+00 : f32
    %10 = vector.broadcast %cst_6 : f32 to vector<8x32xf32>
    %11 = arith.maximumf %9, %10 : vector<8x32xf32>
    %c0_7 = arith.constant 0 : index
    %c0_8 = arith.constant 0 : index
    %12 = vector.load %arg8[%c0_7, %c0_8] : memref<8x128xf32, #tpu.memory_space<vmem>>, vector<8x128xf32>
    %13 = arith.truncf %11 : vector<8x32xf32> to vector<8x32xbf16>
    %c0_9 = arith.constant 0 : index
    %c0_10 = arith.constant 0 : index
    %14 = vector.load %arg5[%c0_9, %c0_10] : memref<32x128xbf16, #tpu.memory_space<vmem>>, vector<32x128xbf16>
    %cst_11 = arith.constant dense<0.000000e+00> : vector<8x128xf32>
    %15 = tpu.matmul %13, %14, %cst_11 {dimension_numbers = #tpu.dot_dimension_numbers<[1], [0], [0], [1], [0, 0, 1, 1], [], []>} : vector<8x32xbf16>, vector<32x128xbf16>, vector<8x128xf32> -> vector<8x128xf32>
    %16 = arith.addf %12, %15 : vector<8x128xf32>
    %c0_12 = arith.constant 0 : index
    %c0_13 = arith.constant 0 : index
    %17 = vector.load %arg8[%c0_12, %c0_13] : memref<8x128xf32, #tpu.memory_space<vmem>>, vector<8x128xf32>
    tpu.vector_store %arg8[%c0_12, %c0_13], %16 {strides = array<i32>} : memref<8x128xf32, #tpu.memory_space<vmem>>, vector<8x128xf32>,
    %c0_i32_14 = arith.constant 0 : i32
    %18 = arith.cmpi eq, %arg1, %c0_i32_14 : i32
    %19 = arith.extui %18 : i1 to i32
    %c0_i32_15 = arith.constant 0 : i32
    %20 = arith.cmpi ne, %19, %c0_i32_15 : i32
    scf.if %20 {
      %c0_16 = arith.constant 0 : index
      %c0_17 = arith.constant 0 : index
      %21 = vector.load %arg8[%c0_16, %c0_17] : memref<8x128xf32, #tpu.memory_space<vmem>>, vector<8x128xf32>
      %c0_18 = arith.constant 0 : index
      %c0_19 = arith.constant 0 : index
      %22 = vector.load %arg6[%c0_18, %c0_19] : memref<1x128xf32, #tpu.memory_space<vmem>>, vector<1x128xf32>
      %23 = vector.broadcast %22 : vector<1x128xf32> to vector<8x128xf32>
      %24 = arith.addf %21, %23 : vector<8x128xf32>
      %cst_20 = arith.constant dense<0xFF800000> : vector<8xf32>
      %25 = vector.multi_reduction <maximumf>, %24, %cst_20 [1] : vector<8x128xf32> to vector<8xf32>
      %26 = vector.shape_cast %25 : vector<8xf32> to vector<8x1xf32>
      %27 = vector.broadcast %26 : vector<8x1xf32> to vector<8x128xf32>
      %28 = arith.subf %24, %27 : vector<8x128xf32>
      %29 = math.exp %28 : vector<8x128xf32>
      %cst_21 = arith.constant dense<0.000000e+00> : vector<8xf32>
      %30 = vector.multi_reduction <add>, %29, %cst_21 [1] : vector<8x128xf32> to vector<8xf32>
      %31 = vector.shape_cast %30 : vector<8xf32> to vector<8x1xf32>
      %32 = math.log %31 : vector<8x1xf32>
      %33 = vector.broadcast %32 : vector<8x1xf32> to vector<8x128xf32>
      %34 = arith.subf %28, %33 : vector<8x128xf32>
      %c0_22 = arith.constant 0 : index
      %c0_23 = arith.constant 0 : index
      %35 = vector.load %arg7[%c0_22, %c0_23] : memref<8x128xf32, #tpu.memory_space<vmem>>, vector<8x128xf32>
      tpu.vector_store %arg7[%c0_22, %c0_23], %34 {strides = array<i32>} : memref<8x128xf32, #tpu.memory_space<vmem>>, vector<8x128xf32>,
    } else {
    }
    return
  }
  func.func @transform_0(%arg0: i32, %arg1: i32) -> (i32, i32) {
    %c0_i32 = arith.constant 0 : i32
    %c0_i32_0 = arith.constant 0 : i32
    return %arg0, %c0_i32 : i32, i32
  }
  func.func @transform_1(%arg0: i32, %arg1: i32) -> (i32, i32) {
    %c0_i32 = arith.constant 0 : i32
    %c0_i32_0 = arith.constant 0 : i32
    return %c0_i32, %arg1 : i32, i32
  }
  func.func @transform_2(%arg0: i32, %arg1: i32) -> (i32, i32) {
    %c0_i32 = arith.constant 0 : i32
    %c0_i32_0 = arith.constant 0 : i32
    return %c0_i32, %arg1 : i32, i32
  }
  func.func @transform_3(%arg0: i32, %arg1: i32) -> (i32, i32) {
    %c0_i32 = arith.constant 0 : i32
    %c0_i32_0 = arith.constant 0 : i32
    return %arg1, %c0_i32 : i32, i32
  }
  func.func @transform_4(%arg0: i32, %arg1: i32) -> (i32, i32) {
    %c0_i32 = arith.constant 0 : i32
    %c0_i32_0 = arith.constant 0 : i32
    %c0_i32_1 = arith.constant 0 : i32
    return %c0_i32, %c0_i32_0 : i32, i32
  }
  func.func @transform_5(%arg0: i32, %arg1: i32) -> (i32, i32) {
    %c0_i32 = arith.constant 0 : i32
    %c0_i32_0 = arith.constant 0 : i32
    return %arg0, %c0_i32 : i32, i32
  }
}

</mosaic_0001>

<llo_original>
// kernel: _forward.1
$region0: #{_forward.1}
  #allocation0 [shape = 'u32[]', space=smem, size = 0x4, offset = 0x4, fixed_abs, tag = 'smem constant byte address 0x4 - core index']
  #allocation1 [shape = 'u32[72,128]{1,0:T(1,128)}', space=vmem, size = 0x9000, scoped, tag = 'internal scratch']
  #allocation2 [shape = 'f32[8,128]{1,0:T(8,128)}', space=vmem, size = 0x1000, scoped, tag = 'scratch operand']
  %s0 = inlined_call_operand.hbm [shape: f32[8,16], index: 0, kind: input, shape index: {}]
  %s1 = inlined_call_operand.hbm [shape: bf16[16,32], index: 1, kind: input, shape index: {}]
  %s2 = inlined_call_operand.vmem [shape: f32[1,32], index: 2, kind: input, shape index: {}]
  %s3 = inlined_call_operand.hbm [shape: bf16[32,128], index: 3, kind: input, shape index: {}]
  %s4 = inlined_call_operand.vmem [shape: f32[1,128], index: 4, kind: input, shape index: {}]
  %s5 = inlined_call_operand.vmem [shape: f32[8,128], index: 5, kind: output, shape index: {}]
  %s6 = sld [smem:[#allocation0]]
  $region50: #{_forward.1} parent=0
    _
  %s8 = ssub.s32 1, %s6
  %s9 = scalar_select 0, %s8, %s6
  $region1: #{_forward.1} parent=0
    #allocation3 [shape = 'u8[4096]{0}', space=vmem, size = 0x1000, scoped, tag = 'input window, operand 0, single buffered']
    #allocation4 [shape = 's32[1]{0}', space=sflag, size = 0x4, scoped, tag = 'scoped memory for _forward.1']
    #allocation5 [shape = 'u8[4096]{0}', space=vmem, size = 0x1000, scoped, tag = 'input window, operand 1, single buffered']
    #allocation6 [shape = 's32[1]{0}', space=sflag, size = 0x4, scoped, tag = 'scoped memory for _forward.1']
    #allocation7 [shape = 'u8[8192]{0}', space=vmem, size = 0x2000, scoped, tag = 'input window, operand 3, single buffered']
    %10 = vsyncpa [#allocation4], 0
    %11 = vsyncpa [#allocation6], 0
    // Predicated region
    $region2: #{_forward.1} parent=1 // pred_check
      _
    $region3: #{_forward.1} parent=1 // pred_check_branch
      %13 = sbr.rel (0) target = $region5
    $region4: #{_forward.1} parent=1 // pred_region
      %15 = vsyncadd [#allocation4], 0
      %s17 = sshll.u32 %s0, 4
      %s18 = int_to_ptr.hbm [resolvable:$true] %s17
      %s19 = sshll.u32 [#allocation3], 4
      %s20 = int_to_ptr.vmem [resolvable:$true] %s19
      %22 = dma.hbm_to_vmem [thread:$0]  %s18, 128, %s20, [#allocation4]
    $region5: #{_forward.1} parent=1 // pred_fallthru
      _
    // Predicated region
    $region6: #{_forward.1} parent=1 // pred_check
      _
    $region7: #{_forward.1} parent=1 // pred_check_branch
      %24 = sbr.rel (0) target = $region9
    $region8: #{_forward.1} parent=1 // pred_region
      %26 = vsyncadd [#allocation6], 0
      %s27 = sshll.u32 %s1, 4
      %s28 = int_to_ptr.hbm [resolvable:$true] %s27
      %s29 = sshll.u32 [#allocation5], 4
      %s30 = int_to_ptr.vmem [resolvable:$true] %s29
      %35 = dma.hbm_to_vmem [thread:$0]  %s28, 128, %s30, [#allocation6], 64, 64, 4
    $region9: #{_forward.1} parent=1 // pred_fallthru
      _
    // Predicated region
    $region10: #{_forward.1} parent=1 // pred_check
      _
    $region11: #{_forward.1} parent=1 // pred_check_branch
      %37 = sbr.rel (0) target = $region13
    $region12: #{_forward.1} parent=1 // pred_region
      _
    $region13: #{_forward.1} parent=1 // pred_fallthru
      _
    // Predicated region
    $region14: #{_forward.1} parent=1 // pred_check
      _
    $region15: #{_forward.1} parent=1 // pred_check_branch
      %39 = sbr.rel (0) target = $region17
    $region16: #{_forward.1} parent=1 // pred_region
      %41 = vsyncadd [#allocation6], 0
      %s42 = sshll.u32 %s3, 4
      %s43 = int_to_ptr.hbm [resolvable:$true] %s42
      %s44 = sshll.u32 [#allocation7], 4
      %s45 = int_to_ptr.vmem [resolvable:$true] %s44
      %50 = dma.hbm_to_vmem [thread:$0]  %s43, 256, %s45, [#allocation6], 64, 64, 4
    $region17: #{_forward.1} parent=1 // pred_fallthru
      _
    // Predicated region
    $region18: #{_forward.1} parent=1 // pred_check
      _
    $region19: #{_forward.1} parent=1 // pred_check_branch
      %52 = sbr.rel (0) target = $region21
    $region20: #{_forward.1} parent=1 // pred_region
      _
    $region21: #{_forward.1} parent=1 // pred_fallthru
      _
    // Predicated region
    $region22: #{_forward.1} parent=1 // pred_check
      _
    $region23: #{_forward.1} parent=1 // pred_check_branch
      %54 = sbr.rel (0) target = $region25
    $region24: #{_forward.1} parent=1 // pred_region
      %56 = dma.done [#allocation4], 128
    $region25: #{_forward.1} parent=1 // pred_fallthru
      _
    // Predicated region
    $region26: #{_forward.1} parent=1 // pred_check
      _
    $region27: #{_forward.1} parent=1 // pred_check_branch
      %58 = sbr.rel (0) target = $region29
    $region28: #{_forward.1} parent=1 // pred_region
      %60 = dma.done [#allocation6], 128
    $region29: #{_forward.1} parent=1 // pred_fallthru
      _
    // Predicated region
    $region30: #{_forward.1} parent=1 // pred_check
      _
    $region31: #{_forward.1} parent=1 // pred_check_branch
      %62 = sbr.rel (0) target = $region33
    $region32: #{_forward.1} parent=1 // pred_region
      %64 = dma.done [#allocation6], 256
    $region33: #{_forward.1} parent=1 // pred_fallthru
      _
    %p66 = scmp.eq.s32.totalorder 0, 0
    // Predicated region
    $region34: #{_forward.1} parent=1 // pred_check
      %p67 = pneg %p66
    $region35: #{_forward.1} parent=1 // pred_check_branch
      %69 = sbr.rel (%p67) target = $region37
    $region36: #{_forward.1} parent=1 // pred_region
      %70 = vst [vmem:[#allocation2] sm:$0xff] 0.0
    $region37: #{_forward.1} parent=1 // pred_fallthru
      _
    %v71 = vld [vmem:[#allocation3] sm:$0xff]
    %v72 = vpack.c.bf16 %v71, %v71
    %v73 = vld [vmem:[#allocation5] sm:$0xf]
    %v74 = vld [vmem:[#allocation5 + $0x4] sm:$0xf]
    %v75 = vld [vmem:[%s2] sm:$0x1]
    %v77 = vperm.slane %v75, 0
    %v81 = vunpack.c.l.b16 %v73
    %v82 = vunpack.c.l.b16 %v74
    %v83 = vpack.c.b16 %v82, %v81
    %vm85 = vcmask 130048
    %v87 = vsel %vm85, %v72, 0
    %89 = vmatpush.bf16.msra.mxu0 0
    %90 = vmatpush.bf16.msra.mxu0 0
    %91 = vmatpush.bf16.msra.mxu0 0
    %92 = vmatpush.bf16.msra.mxu0 0
    %93 = vmatpush.bf16.msra.mxu0 0
    %94 = vmatpush.bf16.msra.mxu0 0
    %95 = vmatpush.bf16.msra.mxu0 0
    %96 = vmatpush.bf16.msra.mxu0 %v83
    %97 = vmatmul.bf16.gmra.mxu0 %v87
    %v98 = vpop.f32.mrf.mxu0
    %v99 = vadd.f32 %v77, %v98
    %v100 = vpop.f32.mrf.mxu0
    %101 = vdwg.mxu0
    %v102 = vmax.f32 %v99, 0.0
    %v103 = vld [vmem:[#allocation2] sm:$0xff]
    %v104 = vpack.c.bf16 %v102, %v102
    %v105 = vld [vmem:[#allocation7] sm:$0xf]
    %v106 = vld [vmem:[#allocation7 + $0x4] sm:$0xf]
    %v107 = vld [vmem:[#allocation7 + $0x8] sm:$0xf]
    %v108 = vld [vmem:[#allocation7 + $0xc] sm:$0xf]
    %v113 = vunpack.c.l.b16 %v105
    %v114 = vunpack.c.l.b16 %v106
    %v115 = vunpack.c.l.b16 %v107
    %v116 = vunpack.c.l.b16 %v108
    %v117 = vpack.c.b16 %v114, %v113
    %v118 = vpack.c.b16 %v116, %v115
    %vm121 = vcmask 261120
    %v123 = vsel %vm121, %v104, 0
    %125 = vmatpush.bf16.msra.mxu0 0
    %126 = vmatpush.bf16.msra.mxu0 0
    %127 = vmatpush.bf16.msra.mxu0 0
    %128 = vmatpush.bf16.msra.mxu0 0
    %129 = vmatpush.bf16.msra.mxu0 0
    %130 = vmatpush.bf16.msra.mxu0 0
    %131 = vmatpush.bf16.msra.mxu0 %v118
    %132 = vmatpush.bf16.msra.mxu0 %v117
    %133 = vmatmul.bf16.gmra.mxu0 %v123
    %v134 = vpop.f32.mrf.mxu0
    %v135 = vadd.f32 0.0, %v134
    %v136 = vpop.f32.mrf.mxu0
    %137 = vdwg.mxu0
    %v138 = vadd.f32 %v103, %v135
    %139 = vst [vmem:[#allocation2] sm:$0xff] %v138
    // Predicated region
    $region38: #{_forward.1} parent=1 // pred_check
      %p140 = pneg %p66
    $region39: #{_forward.1} parent=1 // pred_check_branch
      %142 = sbr.rel (%p140) target = $region41
    $region40: #{_forward.1} parent=1 // pred_region
      %v143 = vld [vmem:[#allocation2] sm:$0xff]
      %v144 = vld [vmem:[%s4] sm:$0x1]
      %v146 = vperm.slane %v144, 0
      %v148 = vadd.f32 %v143, %v146
      %149 = vmax.xlane.f32.xlu0 %v148
      %v150 = vpop.xlane.xlu0 %149
      %v151 = vsub.f32 %v148, %v150
      %v152 = vmul.f32 %v151, 1.442695
      %v153 = vpow.pop %v152
      %154 = vadd.xlane.f32.xlu0 %v153
      %v155 = vpop.xlane.xlu0 %154
      %v156 = vlog2.pop %v155
      %v157 = vmul.f32 %v156, 0.6931472
      %v158 = vsub.f32 %v151, %v157
      %159 = vst [vmem:[%s5] sm:$0xff] %v158
    $region41: #{_forward.1} parent=1 // pred_fallthru
      _
    // Predicated region
    $region42: #{_forward.1} parent=1 // pred_check
      _
    $region43: #{_forward.1} parent=1 // pred_check_branch
      %161 = sbr.rel (0) target = $region45
    $region44: #{_forward.1} parent=1 // pred_region
      _
    $region45: #{_forward.1} parent=1 // pred_fallthru
      _
    // Predicated region
    $region46: #{_forward.1} parent=1 // pred_check
      _
    $region47: #{_forward.1} parent=1 // pred_check_branch
      %163 = sbr.rel (0) target = $region49
    $region48: #{_forward.1} parent=1 // pred_region
      _
    $region49: #{_forward.1} parent=1 // pred_fallthru
      _
    %164 = vsyncpa [#allocation4], 1
    %165 = vsyncpa [#allocation6], 1

</llo_original>
